<compile_context>
chip_gen: v6e
topology: v6e:2x2x1
jax: 0.10.0
libtpu: 0.0.40
codegen_flags: <defaults>
</compile_context>

<pallas_src>
import jax
import jax.numpy as jnp
from jax.experimental import pallas as pl
from jax.experimental.pallas import tpu as pltpu


_SQRT_HALF = 0.7071067811865476


def _cdiv(a, b):
    return -(-a // b)


def _erf_approx(z):
    # Abramowitz & Stegun 7.1.26 (max abs err ~1.5e-7). The divide goes to the
    # EUP via pl.reciprocal(approx=True) (off the 4 VALU slots); the sign is
    # folded into the final select instead of a sign-multiply.
    a1, a2, a3, a4, a5 = 0.254829592, -0.284496736, 1.421413741, -1.453152027, 1.061405429
    p = 0.3275911
    za = jnp.abs(z)
    t = pl.reciprocal(1.0 + p * za, approx=True)
    poly = ((((a5 * t + a4) * t + a3) * t + a2) * t + a1) * t
    e = 1.0 - poly * jnp.exp(-za * za)
    return jnp.where(z >= 0, e, -e)


def _gelu_exact(x):
    # Matches PyTorch nn.GELU() default (erf form) to ~1e-6.
    return 0.5 * x * (1.0 + _erf_approx(x * _SQRT_HALF))


# ---------------------------------------------------------------------------
# Kernel bodies
# ---------------------------------------------------------------------------

def _mlp_kernel_fused(x_ref, w1_ref, b1_ref, w2_ref, b2_ref, o_ref):
    """Whole hidden dim resident: 1-D token grid, weights loaded once."""
    h = jnp.dot(x_ref[...].astype(w1_ref.dtype), w1_ref[...],
                preferred_element_type=jnp.float32)
    h = _gelu_exact(h + b1_ref[...].astype(jnp.float32))
    # TODO(synk): nn.Dropout (p=0.0 default / eval mode) is an identity; no
    # stochastic dropout masking is implemented in-kernel.
    out = jnp.dot(h.astype(w2_ref.dtype), w2_ref[...],
                  preferred_element_type=jnp.float32)
    o_ref[...] = (out + b2_ref[...].astype(jnp.float32)).astype(o_ref.dtype)


def _mlp_kernel_reduce_inplace(x_ref, w1_ref, b1_ref, w2_ref, b2_ref, o_ref):
    """Hidden-tiled reduction, f32 output: accumulate straight into o_ref."""
    j = pl.program_id(1)

    @pl.when(j == 0)
    def _():
        o_ref[...] = jnp.zeros_like(o_ref)

    h = jnp.dot(x_ref[...].astype(w1_ref.dtype), w1_ref[...],
                preferred_element_type=jnp.float32)
    h = _gelu_exact(h + b1_ref[...].astype(jnp.float32))
    o_ref[...] += jnp.dot(h.astype(w2_ref.dtype), w2_ref[...],
                          preferred_element_type=jnp.float32)

    @pl.when(j == pl.num_programs(1) - 1)
    def _():
        o_ref[...] += b2_ref[...].astype(jnp.float32)


def _mlp_kernel_reduce_scratch(x_ref, w1_ref, b1_ref, w2_ref, b2_ref, o_ref, acc_ref):
    """Hidden-tiled reduction, non-f32 output: f32 VMEM accumulator scratch."""
    j = pl.program_id(1)

    @pl.when(j == 0)
    def _():
        acc_ref[...] = jnp.zeros_like(acc_ref)

    h = jnp.dot(x_ref[...].astype(w1_ref.dtype), w1_ref[...],
                preferred_element_type=jnp.float32)
    h = _gelu_exact(h + b1_ref[...].astype(jnp.float32))
    acc_ref[...] += jnp.dot(h.astype(w2_ref.dtype), w2_ref[...],
                            preferred_element_type=jnp.float32)

    @pl.when(j == pl.num_programs(1) - 1)
    def _():
        o_ref[...] = (acc_ref[...] + b2_ref[...].astype(jnp.float32)).astype(o_ref.dtype)


# ---------------------------------------------------------------------------
# Host-side wrapper: tile / VMEM budget selection and pallas_call dispatch
# ---------------------------------------------------------------------------

def _vmem_budget_bytes():
    """Per-generation VMEM budget (v5e/v6e: 128 MiB phys; v7x: 64 MiB)."""
    cap = 64 * 1024 * 1024
    try:
        info = pltpu.get_tpu_info()
        cap = int(getattr(info, "vmem_capacity_bytes", cap))
    except Exception:
        pass
    if cap >= 128 * 1024 * 1024:
        return 100 * 1024 * 1024       # v5e / v6e
    return 52 * 1024 * 1024            # v7x: leave headroom under 64 MiB


def _hidden_tile_candidates(h, cap=None):
    """Divisors of h that are multiples of 128 (plus h itself), descending."""
    cands = {h}
    if h % 128 == 0:
        n = h // 128
        for d in range(1, n + 1):
            if n % d == 0:
                cands.add(128 * d)
    out = sorted(cands, reverse=True)
    if cap is not None:
        capped = [c for c in out if c <= cap]
        out = capped if capped else [out[-1]]
    return out


def mlp_forward(x, w1, b1, w2, b2, *, tile_m=None, tile_h=None,
                compute_dtype=jnp.bfloat16):
    """Fused fc1 -> GELU -> fc2 forward pass. x: (..., in_features)."""
    orig_shape = x.shape
    d_in = orig_shape[-1]
    d_hidden = w1.shape[1]
    d_out = w2.shape[1]
    assert w1.shape == (d_in, d_hidden)
    assert b1.shape == (d_hidden,)
    assert w2.shape == (d_hidden, d_out)
    assert b2.shape == (d_out,)

    out_dtype = x.dtype
    x2 = x.reshape(-1, d_in)
    m = x2.shape[0]

    # bf16 MXU operands (f32 accumulate via preferred_element_type).
    w1c = w1.astype(compute_dtype)
    w2c = w2.astype(compute_dtype)
    b1_2 = b1.reshape(1, d_hidden)
    b2_2 = b2.reshape(1, d_out)

    budget = _vmem_budget_bytes()
    bytes_x = jnp.dtype(x2.dtype).itemsize
    bytes_c = jnp.dtype(compute_dtype).itemsize
    bytes_o = jnp.dtype(out_dtype).itemsize

    # ---- token tile --------------------------------------------------------
    if tile_m is None:
        tile_m_eff = 1024 if budget > 64 * 1024 * 1024 else 512
        tm = min(tile_m_eff, m)
        if tm < m:
            tm = max(8, (tm // 8) * 8)
        elif m >= 16:
            # >= 2 token tiles so the "parallel" axis can shard across v7x's
            # two TensorCores (negligible cost on 1-TC chips).
            tm = max(8, ((_cdiv(m, 2) + 7) // 8) * 8)
    else:
        tm = min(tile_m, m)
        if tm < m:
            tm = max(8, (tm // 8) * 8)

    # ---- hidden tile / VMEM fit ---------------------------------------------
    def est_vmem(tm_, th_, use_scratch):
        need = 2 * tm_ * d_in * bytes_x            # x tile (double-buffered)
        need += 2 * d_in * th_ * bytes_c           # w1 block
        need += 2 * th_ * d_out * bytes_c          # w2 block
        need += 2 * tm_ * d_out * bytes_o          # out block
        need += 2 * (th_ + d_out) * 4              # biases
        need += 3 * tm_ * th_ * 4                  # f32 hidden + GELU temporaries
        if use_scratch:
            need += tm_ * d_out * 4                # f32 accumulator scratch
        return need

    cands = _hidden_tile_candidates(d_hidden, cap=tile_h)
    th = cands[-1]
    for c in cands:
        scratch_needed = (c < d_hidden) and (out_dtype != jnp.float32)
        if est_vmem(tm, c, scratch_needed) <= budget:
            th = c
            break
    # Last resort: shrink the token tile until the smallest hidden tile fits.
    while est_vmem(tm, th, True) > budget and tm > 8:
        tm = max(8, ((tm // 2) // 8) * 8)

    n_m = _cdiv(m, tm)
    n_h = d_hidden // th

    # ---- grid / specs --------------------------------------------------------
    if n_h == 1:
        # Weights fully resident in VMEM: block index constant => loaded once
        # for the whole kernel; no accumulator, no init/finalize path.
        kernel = _mlp_kernel_fused
        grid = (n_m,)
        in_specs = [
            pl.BlockSpec((tm, d_in), lambda i: (i, 0)),          # x tile
            pl.BlockSpec((d_in, d_hidden), lambda i: (0, 0)),    # w1 (resident)
            pl.BlockSpec((1, d_hidden), lambda i: (0, 0)),       # b1
            pl.BlockSpec((d_hidden, d_out), lambda i: (0, 0)),   # w2 (resident)
            pl.BlockSpec((1, d_out), lambda i: (0, 0)),          # b2
        ]
        out_specs = pl.BlockSpec((tm, d_out), lambda i: (i, 0))
        scratch_shapes = []
        dim_sem = ("parallel",)
    else:
        if out_dtype == jnp.float32:
            # Accumulate straight into the resident output block (no scratch).
            kernel = _mlp_kernel_reduce_inplace
            scratch_shapes = []
        else:
            kernel = _mlp_kernel_reduce_scratch
            scratch_shapes = [pltpu.VMEM((tm, d_out), jnp.float32)]
        grid = (n_m, n_h)
        in_specs = [
            pl.BlockSpec((tm, d_in), lambda i, j: (i, 0)),    # x tile
            pl.BlockSpec((d_in, th), lambda i, j: (0, j)),    # w1 column block
            pl.BlockSpec((1, th), lambda i, j: (0, j)),       # b1 block
            pl.BlockSpec((th, d_out), lambda i, j: (j, 0)),   # w2 row block
            pl.BlockSpec((1, d_out), lambda i, j: (0, 0)),    # b2
        ]
        out_specs = pl.BlockSpec((tm, d_out), lambda i, j: (i, 0))
        dim_sem = ("parallel", "arbitrary")

    out = pl.pallas_call(
        kernel,
        out_shape=jax.ShapeDtypeStruct((m, d_out), out_dtype),
        grid_spec=pltpu.PrefetchScalarGridSpec(
            num_scalar_prefetch=0,
            grid=grid,
            in_specs=in_specs,
            out_specs=out_specs,
            scratch_shapes=scratch_shapes,
        ),
        compiler_params=pltpu.CompilerParams(
            dimension_semantics=dim_sem,
            vmem_limit_bytes=int(budget),
        ),
    )(x2, w1c, b1_2, w2c, b2_2)

    return out.reshape(*orig_shape[:-1], d_out)


if __name__ == "__main__":
    key = jax.random.PRNGKey(0)
    B, N = 2, 8
    in_features, hidden_features, out_features = 32, 256, 32

    kx, k1, kb1, k2, kb2 = jax.random.split(key, 5)
    x = jax.random.normal(kx, (B, N, in_features), dtype=jnp.float32)
    # JAX layout: w1 == fc1.weight.T, w2 == fc2.weight.T (deterministic init).
    w1 = jax.random.normal(k1, (in_features, hidden_features), jnp.float32) / jnp.sqrt(
        jnp.float32(in_features))
    b1 = 0.1 * jax.random.normal(kb1, (hidden_features,), jnp.float32)
    w2 = jax.random.normal(k2, (hidden_features, out_features), jnp.float32) / jnp.sqrt(
        jnp.float32(hidden_features))
    b2 = 0.1 * jax.random.normal(kb2, (out_features,), jnp.float32)

    # Matched pure-JAX reference: bf16 MXU operands, f32 accumulate, exact
    # (erf) GELU; dropout p=0 is identity.
    def ref_mlp(xv, compute_dtype=jnp.bfloat16):
        cw1 = w1.astype(compute_dtype)
        cw2 = w2.astype(compute_dtype)
        h = jnp.dot(xv.astype(compute_dtype), cw1,
                    preferred_element_type=jnp.float32) + b1
        h = jax.nn.gelu(h, approximate=False)
        return jnp.dot(h.astype(compute_dtype), cw2,
                       preferred_element_type=jnp.float32) + b2

    ref = ref_mlp(x)

    # 1) Default path: weights fully resident (1-D token grid, 2 token tiles).
    y1 = jax.block_until_ready(mlp_forward(x, w1, b1, w2, b2))
    assert y1.shape == ref.shape and y1.dtype == x.dtype
    assert jnp.allclose(y1, ref, atol=1e-2, rtol=1e-2), float(jnp.max(jnp.abs(y1 - ref)))

    # 2) Forced hidden-reduction path (2 hidden tiles), f32 output ->
    #    in-place accumulation into o_ref (no scratch).
    y2 = jax.block_until_ready(mlp_forward(x, w1, b1, w2, b2, tile_m=8, tile_h=128))
    assert jnp.allclose(y2, ref, atol=1e-2, rtol=1e-2), float(jnp.max(jnp.abs(y2 - ref)))

    # 3) bf16 activations + hidden reduction -> f32 scratch-accumulator path.
    xb = x.astype(jnp.bfloat16)
    y3 = jax.block_until_ready(mlp_forward(xb, w1, b1, w2, b2, tile_m=16, tile_h=128))
    assert y3.dtype == jnp.bfloat16
    assert jnp.allclose(y3.astype(jnp.float32), ref, atol=3e-2, rtol=3e-2), \
        float(jnp.max(jnp.abs(y3.astype(jnp.float32) - ref)))

    print("KERNEL_OK")
</pallas_src>

<mosaic_0001>
module attributes {stable_mosaic.version = 11 : i64} {
  func.func @_mlp_kernel_fused(%arg0: i32, %arg1: memref<8x32xf32, #tpu.memory_space<vmem>>, %arg2: memref<32x256xbf16, #tpu.memory_space<vmem>>, %arg3: memref<1x256xf32, #tpu.memory_space<vmem>>, %arg4: memref<256x32xbf16, #tpu.memory_space<vmem>>, %arg5: memref<1x32xf32, #tpu.memory_space<vmem>>, %arg6: memref<8x32xf32, #tpu.memory_space<vmem>>) attributes {dimension_semantics = [#tpu.dimension_semantics<parallel>], iteration_bounds = array<i64: 2>, scalar_prefetch = 0 : i64, scratch_operands = 0 : i64, tpu.core_type = #tpu.core_type<tc>, window_params = [{transform_indices = @transform_0, window_bounds = array<i64: 8, 32>}, {pipeline_mode = #tpu.pipeline_mode<synchronous>, transform_indices = @transform_1, window_bounds = array<i64: 32, 256>}, {pipeline_mode = #tpu.pipeline_mode<synchronous>, transform_indices = @transform_2, window_bounds = array<i64: 1, 256>}, {pipeline_mode = #tpu.pipeline_mode<synchronous>, transform_indices = @transform_3, window_bounds = array<i64: 256, 32>}, {pipeline_mode = #tpu.pipeline_mode<synchronous>, transform_indices = @transform_4, window_bounds = array<i64: 1, 32>}, {transform_indices = @transform_5, window_bounds = array<i64: 8, 32>}]} {
    %c0 = arith.constant 0 : index
    %c0_0 = arith.constant 0 : index
    %0 = vector.load %arg1[%c0, %c0_0] : memref<8x32xf32, #tpu.memory_space<vmem>>, vector<8x32xf32>
    %1 = arith.truncf %0 : vector<8x32xf32> to vector<8x32xbf16>
    %c0_1 = arith.constant 0 : index
    %c0_2 = arith.constant 0 : index
    %2 = vector.load %arg2[%c0_1, %c0_2] : memref<32x256xbf16, #tpu.memory_space<vmem>>, vector<32x256xbf16>
    %cst = arith.constant dense<0.000000e+00> : vector<8x256xf32>
    %3 = tpu.matmul %1, %2, %cst {dimension_numbers = #tpu.dot_dimension_numbers<[1], [0], [0], [1], [0, 0, 1, 1], [], []>} : vector<8x32xbf16>, vector<32x256xbf16>, vector<8x256xf32> -> vector<8x256xf32>
    %c0_3 = arith.constant 0 : index
    %c0_4 = arith.constant 0 : index
    %4 = vector.load %arg3[%c0_3, %c0_4] : memref<1x256xf32, #tpu.memory_space<vmem>>, vector<1x256xf32>
    %5 = vector.broadcast %4 : vector<1x256xf32> to vector<8x256xf32>
    %6 = arith.addf %3, %5 : vector<8x256xf32>
    %cst_5 = arith.constant 5.000000e-01 : f32
    %7 = vector.broadcast %cst_5 : f32 to vector<8x256xf32>
    %8 = arith.mulf %7, %6 : vector<8x256xf32>
    %cst_6 = arith.constant 0.707106769 : f32
    %9 = vector.broadcast %cst_6 : f32 to vector<8x256xf32>
    %10 = arith.mulf %6, %9 : vector<8x256xf32>
    %11 = math.absf %10 : vector<8x256xf32>
    %cst_7 = arith.constant 0.327591091 : f32
    %12 = vector.broadcast %cst_7 : f32 to vector<8x256xf32>
    %13 = arith.mulf %12, %11 : vector<8x256xf32>
    %cst_8 = arith.constant 1.000000e+00 : f32
    %14 = vector.broadcast %cst_8 : f32 to vector<8x256xf32>
    %15 = arith.addf %14, %13 : vector<8x256xf32>
    %16 = tpu.reciprocal %15 {approx = true} : vector<8x256xf32> -> vector<8x256xf32>
    %cst_9 = arith.constant 1.06140542 : f32
    %17 = vector.broadcast %cst_9 : f32 to vector<8x256xf32>
    %18 = arith.mulf %17, %16 : vector<8x256xf32>
    %cst_10 = arith.constant -1.45315206 : f32
    %19 = vector.broadcast %cst_10 : f32 to vector<8x256xf32>
    %20 = arith.addf %18, %19 : vector<8x256xf32>
    %21 = arith.mulf %20, %16 : vector<8x256xf32>
    %cst_11 = arith.constant 1.42141378 : f32
    %22 = vector.broadcast %cst_11 : f32 to vector<8x256xf32>
    %23 = arith.addf %21, %22 : vector<8x256xf32>
    %24 = arith.mulf %23, %16 : vector<8x256xf32>
    %cst_12 = arith.constant -0.284496725 : f32
    %25 = vector.broadcast %cst_12 : f32 to vector<8x256xf32>
    %26 = arith.addf %24, %25 : vector<8x256xf32>
    %27 = arith.mulf %26, %16 : vector<8x256xf32>
    %cst_13 = arith.constant 0.254829586 : f32
    %28 = vector.broadcast %cst_13 : f32 to vector<8x256xf32>
    %29 = arith.addf %27, %28 : vector<8x256xf32>
    %30 = arith.mulf %29, %16 : vector<8x256xf32>
    %cst_14 = arith.constant 0.000000e+00 : f32
    %31 = vector.broadcast %cst_14 : f32 to vector<8x256xf32>
    %32 = arith.subf %31, %11 : vector<8x256xf32>
    %33 = arith.mulf %32, %11 : vector<8x256xf32>
    %34 = math.exp %33 : vector<8x256xf32>
    %35 = arith.mulf %30, %34 : vector<8x256xf32>
    %cst_15 = arith.constant 1.000000e+00 : f32
    %36 = vector.broadcast %cst_15 : f32 to vector<8x256xf32>
    %37 = arith.subf %36, %35 : vector<8x256xf32>
    %cst_16 = arith.constant 0.000000e+00 : f32
    %38 = vector.broadcast %cst_16 : f32 to vector<8x256xf32>
    %39 = arith.cmpf oge, %10, %38 : vector<8x256xf32>
    %cst_17 = arith.constant 0.000000e+00 : f32
    %40 = vector.broadcast %cst_17 : f32 to vector<8x256xf32>
    %41 = arith.subf %40, %37 : vector<8x256xf32>
    %42 = arith.select %39, %37, %41 : vector<8x256xi1>, vector<8x256xf32>
    %cst_18 = arith.constant 1.000000e+00 : f32
    %43 = vector.broadcast %cst_18 : f32 to vector<8x256xf32>
    %44 = arith.addf %43, %42 : vector<8x256xf32>
    %45 = arith.mulf %8, %44 : vector<8x256xf32>
    %46 = arith.truncf %45 : vector<8x256xf32> to vector<8x256xbf16>
    %c0_19 = arith.constant 0 : index
    %c0_20 = arith.constant 0 : index
    %47 = vector.load %arg4[%c0_19, %c0_20] : memref<256x32xbf16, #tpu.memory_space<vmem>>, vector<256x32xbf16>
    %cst_21 = arith.constant dense<0.000000e+00> : vector<8x32xf32>
    %48 = tpu.matmul %46, %47, %cst_21 {dimension_numbers = #tpu.dot_dimension_numbers<[1], [0], [0], [1], [0, 0, 1, 1], [], []>} : vector<8x256xbf16>, vector<256x32xbf16>, vector<8x32xf32> -> vector<8x32xf32>
    %c0_22 = arith.constant 0 : index
    %c0_23 = arith.constant 0 : index
    %49 = vector.load %arg5[%c0_22, %c0_23] : memref<1x32xf32, #tpu.memory_space<vmem>>, vector<1x32xf32>
    %50 = vector.broadcast %49 : vector<1x32xf32> to vector<8x32xf32>
    %51 = arith.addf %48, %50 : vector<8x32xf32>
    %c0_24 = arith.constant 0 : index
    %c0_25 = arith.constant 0 : index
    %52 = vector.load %arg6[%c0_24, %c0_25] : memref<8x32xf32, #tpu.memory_space<vmem>>, vector<8x32xf32>
    tpu.vector_store %arg6[%c0_24, %c0_25], %51 {strides = array<i32>} : memref<8x32xf32, #tpu.memory_space<vmem>>, vector<8x32xf32>,
    return
  }
  func.func @transform_0(%arg0: i32) -> (i32, i32) {
    %c0_i32 = arith.constant 0 : i32
    %c0_i32_0 = arith.constant 0 : i32
    return %arg0, %c0_i32 : i32, i32
  }
  func.func @transform_1(%arg0: i32) -> (i32, i32) {
    %c0_i32 = arith.constant 0 : i32
    %c0_i32_0 = arith.constant 0 : i32
    %c0_i32_1 = arith.constant 0 : i32
    return %c0_i32, %c0_i32_0 : i32, i32
  }
  func.func @transform_2(%arg0: i32) -> (i32, i32) {
    %c0_i32 = arith.constant 0 : i32
    %c0_i32_0 = arith.constant 0 : i32
    %c0_i32_1 = arith.constant 0 : i32
    return %c0_i32, %c0_i32_0 : i32, i32
  }
  func.func @transform_3(%arg0: i32) -> (i32, i32) {
    %c0_i32 = arith.constant 0 : i32
    %c0_i32_0 = arith.constant 0 : i32
    %c0_i32_1 = arith.constant 0 : i32
    return %c0_i32, %c0_i32_0 : i32, i32
  }
  func.func @transform_4(%arg0: i32) -> (i32, i32) {
    %c0_i32 = arith.constant 0 : i32
    %c0_i32_0 = arith.constant 0 : i32
    %c0_i32_1 = arith.constant 0 : i32
    return %c0_i32, %c0_i32_0 : i32, i32
  }
  func.func @transform_5(%arg0: i32) -> (i32, i32) {
    %c0_i32 = arith.constant 0 : i32
    %c0_i32_0 = arith.constant 0 : i32
    return %arg0, %c0_i32 : i32, i32
  }
}

</mosaic_0001>

<llo_original>
// kernel: tpu_custom_call.1
$region0: #{tpu_custom_call.1}
  #allocation0 [shape = 'u32[]', space=smem, size = 0x4, offset = 0x4, fixed_abs, tag = 'smem constant byte address 0x4 - core index']
  #allocation1 [shape = 'u32[144,128]{1,0:T(1,128)}', space=vmem, size = 0x12000, scoped, tag = 'internal scratch']
  %s0 = inlined_call_operand.vmem [shape: f32[16,32], index: 0, kind: input, shape index: {}]
  %s1 = inlined_call_operand.vmem [shape: bf16[32,256], index: 1, kind: input, shape index: {}]
  %s2 = inlined_call_operand.vmem [shape: f32[1,256], index: 2, kind: input, shape index: {}]
  %s3 = inlined_call_operand.vmem [shape: bf16[256,32], index: 3, kind: input, shape index: {}]
  %s4 = inlined_call_operand.vmem [shape: f32[1,32], index: 4, kind: input, shape index: {}]
  %s5 = inlined_call_operand.hbm [shape: f32[16,32], index: 5, kind: output, shape index: {}]
  %s6 = sld [smem:[#allocation0]]
  $region53: #{tpu_custom_call.1} parent=0
    _
  %s8 = ssub.s32 1, %s6
  %s9 = scalar_select 0, %s8, %s6
  $region1: #{tpu_custom_call.1} parent=0
    #allocation2 [shape = 'u8[8192]{0}', space=vmem, size = 0x2000, scoped, tag = 'output window, operand 0']
    #allocation3 [shape = 's32[2]{0}', space=sflag, size = 0x8, scoped, tag = 'scoped memory for tpu_custom_call.1']
    %10 = vsyncpa [#allocation3], 0
    %s11 = scalar_lea.sflag [#allocation3], 1
    %12 = vsyncpa %s11, 0
    loop: start=0, step=1, limit=4
    $region2: #{tpu_custom_call.1} parent=1 // loop_pre_header
      _
    $region3: #{tpu_custom_call.1} parent=1 // loop_header
      %s14 = sphi 0, %s18
      %p15 = scmp.ge.s32.totalorder %s14, 4
      %s24 = sphi 0, %s26
      %s27 = sphi 0, %s24
      %s28 = sphi 0, %s27
      %s44 = sphi 0, %s28
      %s48 = sphi 0, %s48
      %s50 = sphi 0, %s48
      %s51 = sphi 0, %s50
      %s65 = sphi 0, %s51
      %s69 = sphi 0, %s69
      %s71 = sphi 0, %s69
      %s72 = sphi 0, %s71
      %s86 = sphi 0, %s72
      %s90 = sphi 0, %s90
      %s92 = sphi 0, %s90
      %s93 = sphi 0, %s92
      %s107 = sphi 0, %s93
      %s111 = sphi 0, %s111
      %s113 = sphi 0, %s111
      %s114 = sphi 0, %s113
      %s128 = sphi 0, %s114
      %s134 = sphi 0, %s136
      %s137 = sphi 0, %s134
      %s138 = sphi 0, %s137
      %s154 = sphi 0, %s138
    $region4: #{tpu_custom_call.1} parent=1 // loop_header_branch
      %17 = sbr.rel (%p15) target = $region8
    $region5: #{tpu_custom_call.1} parent=1 // loop_body
      %s19 = ssub.s32 %s14, 1
      %s20 = ssub.s32 %s14, 2
      %s21 = sadd.s32 %s14, 1
      %s22 = ssub.s32 %s14, %s21
      %p23 = scmp.eq.s32.totalorder %s22, 0
      %s25 = sadd.s32 %s24, 1
      %s26 = scalar_select %p23, %s24, %s25
      %p29 = pneg %p23
      %p30 = scmp.eq.s32.totalorder %s14, 1
      %p31 = por %p29, %p30
      %p32 = scmp.ne.s32.totalorder %s24, %s27
      %p33 = scmp.eq.s32.totalorder %s14, 0
      %p34 = por %p32, %p33
      %p35 = scmp.ne.s32.totalorder %s24, %s27
      %p36 = scmp.eq.s32.totalorder %s19, 1
      %p37 = por %p35, %p36
      %p38 = scmp.ne.s32.totalorder %s27, %s28
      %p39 = scmp.eq.s32.totalorder %s19, 0
      %p40 = por %p38, %p39
      %p41 = scmp.ne.s32.totalorder %s27, %s28
      %p42 = scmp.eq.s32.totalorder %s20, 1
      %p43 = por %p41, %p42
      %p45 = scmp.ne.s32.totalorder %s28, %s44
      %p46 = scmp.eq.s32.totalorder %s20, 0
      %p47 = por %p45, %p46
      %s49 = sadd.s32 %s48, 1
      %p52 = scmp.eq.s32.totalorder %s14, 1
      %p53 = scmp.ne.s32.totalorder %s48, %s50
      %p54 = scmp.eq.s32.totalorder %s14, 0
      %p55 = por %p53, %p54
      %p56 = scmp.ne.s32.totalorder %s48, %s50
      %p57 = scmp.eq.s32.totalorder %s19, 1
      %p58 = por %p56, %p57
      %p59 = scmp.ne.s32.totalorder %s50, %s51
      %p60 = scmp.eq.s32.totalorder %s19, 0
      %p61 = por %p59, %p60
      %p62 = scmp.ne.s32.totalorder %s50, %s51
      %p63 = scmp.eq.s32.totalorder %s20, 1
      %p64 = por %p62, %p63
      %p66 = scmp.ne.s32.totalorder %s51, %s65
      %p67 = scmp.eq.s32.totalorder %s20, 0
      %p68 = por %p66, %p67
      %s70 = sadd.s32 %s69, 1
      %p73 = scmp.eq.s32.totalorder %s14, 1
      %p74 = scmp.ne.s32.totalorder %s69, %s71
      %p75 = scmp.eq.s32.totalorder %s14, 0
      %p76 = por %p74, %p75
      %p77 = scmp.ne.s32.totalorder %s69, %s71
      %p78 = scmp.eq.s32.totalorder %s19, 1
      %p79 = por %p77, %p78
      %p80 = scmp.ne.s32.totalorder %s71, %s72
      %p81 = scmp.eq.s32.totalorder %s19, 0
      %p82 = por %p80, %p81
      %p83 = scmp.ne.s32.totalorder %s71, %s72
      %p84 = scmp.eq.s32.totalorder %s20, 1
      %p85 = por %p83, %p84
      %p87 = scmp.ne.s32.totalorder %s72, %s86
      %p88 = scmp.eq.s32.totalorder %s20, 0
      %p89 = por %p87, %p88
      %s91 = sadd.s32 %s90, 1
      %p94 = scmp.eq.s32.totalorder %s14, 1
      %p95 = scmp.ne.s32.totalorder %s90, %s92
      %p96 = scmp.eq.s32.totalorder %s14, 0
      %p97 = por %p95, %p96
      %p98 = scmp.ne.s32.totalorder %s90, %s92
      %p99 = scmp.eq.s32.totalorder %s19, 1
      %p100 = por %p98, %p99
      %p101 = scmp.ne.s32.totalorder %s92, %s93
      %p102 = scmp.eq.s32.totalorder %s19, 0
      %p103 = por %p101, %p102
      %p104 = scmp.ne.s32.totalorder %s92, %s93
      %p105 = scmp.eq.s32.totalorder %s20, 1
      %p106 = por %p104, %p105
      %p108 = scmp.ne.s32.totalorder %s93, %s107
      %p109 = scmp.eq.s32.totalorder %s20, 0
      %p110 = por %p108, %p109
      %s112 = sadd.s32 %s111, 1
      %p115 = scmp.eq.s32.totalorder %s14, 1
      %p116 = scmp.ne.s32.totalorder %s111, %s113
      %p117 = scmp.eq.s32.totalorder %s14, 0
      %p118 = por %p116, %p117
      %p119 = scmp.ne.s32.totalorder %s111, %s113
      %p120 = scmp.eq.s32.totalorder %s19, 1
      %p121 = por %p119, %p120
      %p122 = scmp.ne.s32.totalorder %s113, %s114
      %p123 = scmp.eq.s32.totalorder %s19, 0
      %p124 = por %p122, %p123
      %p125 = scmp.ne.s32.totalorder %s113, %s114
      %p126 = scmp.eq.s32.totalorder %s20, 1
      %p127 = por %p125, %p126
      %p129 = scmp.ne.s32.totalorder %s114, %s128
      %p130 = scmp.eq.s32.totalorder %s20, 0
      %p131 = por %p129, %p130
      %s132 = ssub.s32 %s14, %s21
      %p133 = scmp.eq.s32.totalorder %s132, 0
      %s135 = sadd.s32 %s134, 1
      %s136 = scalar_select %p133, %s134, %s135
      %p139 = pneg %p133
      %p140 = scmp.eq.s32.totalorder %s14, 1
      %p141 = por %p139, %p140
      %p142 = scmp.ne.s32.totalorder %s134, %s137
      %p143 = scmp.eq.s32.totalorder %s14, 0
      %p144 = por %p142, %p143
      %p145 = scmp.ne.s32.totalorder %s134, %s137
      %p146 = scmp.eq.s32.totalorder %s19, 1
      %p147 = por %p145, %p146
      %p148 = scmp.ne.s32.totalorder %s137, %s138
      %p149 = scmp.eq.s32.totalorder %s19, 0
      %p150 = por %p148, %p149
      %p151 = scmp.ne.s32.totalorder %s137, %s138
      %p152 = scmp.eq.s32.totalorder %s20, 1
      %p153 = por %p151, %p152
      %p155 = scmp.ne.s32.totalorder %s138, %s154
      %p156 = scmp.eq.s32.totalorder %s20, 0
      %p157 = por %p155, %p156
      %p158 = scmp.le.s32.totalorder 1, %s14
      %p159 = scmp.lt.s32.totalorder %s14, 3
      %p160 = pnand %p158, %p159
      %p161 = pneg %p160
      // Predicated region
      $region9: #{tpu_custom_call.1} parent=5 // pred_check
        _
      $region10: #{tpu_custom_call.1} parent=5 // pred_check_branch
        %163 = sbr.rel (%p160) target = $region12
      $region11: #{tpu_custom_call.1} parent=5 // pred_region
        %s164 = ssub.s32 %s14, 1
        // Predicated region
        $region13: #{tpu_custom_call.1} parent=11 // pred_check
          %p165 = pneg %p61
        $region14: #{tpu_custom_call.1} parent=11 // pred_check_branch
          %167 = sbr.rel (%p165) target = $region16
        $region15: #{tpu_custom_call.1} parent=11 // pred_region
          _
        $region16: #{tpu_custom_call.1} parent=11 // pred_fallthru
          _
        // Predicated region
        $region17: #{tpu_custom_call.1} parent=11 // pred_check
          %p168 = pneg %p82
        $region18: #{tpu_custom_call.1} parent=11 // pred_check_branch
          %170 = sbr.rel (%p168) target = $region20
        $region19: #{tpu_custom_call.1} parent=11 // pred_region
          _
        $region20: #{tpu_custom_call.1} parent=11 // pred_fallthru
          _
        // Predicated region
        $region21: #{tpu_custom_call.1} parent=11 // pred_check
          %p171 = pneg %p103
        $region22: #{tpu_custom_call.1} parent=11 // pred_check_branch
          %173 = sbr.rel (%p171) target = $region24
        $region23: #{tpu_custom_call.1} parent=11 // pred_region
          _
        $region24: #{tpu_custom_call.1} parent=11 // pred_fallthru
          _
        // Predicated region
        $region25: #{tpu_custom_call.1} parent=11 // pred_check
          %p174 = pneg %p124
        $region26: #{tpu_custom_call.1} parent=11 // pred_check_branch
          %176 = sbr.rel (%p174) target = $region28
        $region27: #{tpu_custom_call.1} parent=11 // pred_region
          _
        $region28: #{tpu_custom_call.1} parent=11 // pred_fallthru
          _
      $region12: #{tpu_custom_call.1} parent=5 // pred_fallthru
        _
      %p177 = scmp.lt.s32.totalorder %s14, 2
      // Predicated region
      $region29: #{tpu_custom_call.1} parent=5 // pred_check
        %p178 = pneg %p177
      $region30: #{tpu_custom_call.1} parent=5 // pred_check_branch
        %180 = sbr.rel (%p178) target = $region32
      $region31: #{tpu_custom_call.1} parent=5 // pred_region
        // Predicated region
        $region33: #{tpu_custom_call.1} parent=31 // pred_check
          %p181 = pneg %p34
        $region34: #{tpu_custom_call.1} parent=31 // pred_check_branch
          %183 = sbr.rel (%p181) target = $region36
        $region35: #{tpu_custom_call.1} parent=31 // pred_region
          %p184 = scmp.lt.s32.totalorder %s14, 1
          %s185 = scalar_select %p184, %s14, 1
          %s186 = smul.addr %s185, 8
          %s187 = scalar_lea.vmem %s0, %s186
        $region36: #{tpu_custom_call.1} parent=31 // pred_fallthru
          _
      $region32: #{tpu_custom_call.1} parent=5 // pred_fallthru
        _
      %p188 = scmp.le.s32.totalorder 1, %s14
      %p189 = scmp.lt.s32.totalorder %s14, 3
      %p190 = pnand %p188, %p189
      %p191 = pneg %p190
      // Predicated region
      $region37: #{tpu_custom_call.1} parent=5 // pred_check
        _
      $region38: #{tpu_custom_call.1} parent=5 // pred_check_branch
        %193 = sbr.rel (%p190) target = $region40
      $region39: #{tpu_custom_call.1} parent=5 // pred_region
        %s194 = ssub.s32 %s14, 1
        %p195 = scmp.lt.s32.totalorder %s19, 1
        %s196 = scalar_select %p195, %s19, 1
        %s197 = smul.addr %s196, 8
        %s198 = scalar_lea.vmem %s0, %s197
        %p199 = pneg %p40
        %p200 = pneg %p37
        %p201 = pneg %p61
        %p202 = pneg %p58
        %p203 = pneg %p82
        %p204 = pneg %p79
        %p205 = pneg %p103
        %p206 = pneg %p100
        %p207 = pneg %p124
        %p208 = pneg %p121
        %p209 = pneg %p150
        %p210 = pneg %p147
        %s211 = sand.u32 %s137, 1
        %s212 = scalar_lea.sflag [#allocation3], %s211
        %s213 = sand.u32 %s137, 1
        %s214 = smul.addr %s213, 8
        %s215 = scalar_lea.vmem [#allocation2], %s214
        %p216 = scmp.lt.s32.totalorder %s19, 1
        %s217 = scalar_select %p216, %s19, 1
        %s218 = smul.addr %s217, 8
        %s219 = scalar_lea.vmem %s0, %s218
        %v221 = vld [vmem:[%s219] sm:$0xff]
        %v222 = vpack.c.bf16 %v221, %v221
        %v223 = vld [vmem:[%s1] sm:$0xff]
        %v224 = vld [vmem:[%s1 + $0x8] sm:$0xff]
        %v225 = vld [vmem:[%s1 + $0x10] sm:$0xff]
        %v226 = vld [vmem:[%s1 + $0x18] sm:$0xff]
        %v227 = vld [vmem:[%s2] sm:$0x3]
        %v229 = vlaneseq
        %v230 = vshrl.u32 %v229, 7
        %v231 = vsub.s32 0, %v230
        %v232 = vrot.slane %v227, %v231
        %v233 = vlaneseq
        %v234 = vshrl.u32 %v233, 7
        %v235 = vsub.s32 1, %v234
        %v236 = vrot.slane %v227, %v235
        %v243 = vunpack.c.l.b16 %v223
        %v244 = vunpack.c.h.b16 %v223
        %v245 = vunpack.c.l.b16 %v224
        %v246 = vunpack.c.h.b16 %v224
        %v247 = vunpack.c.l.b16 %v225
        %v248 = vunpack.c.h.b16 %v225
        %v249 = vunpack.c.l.b16 %v226
        %v250 = vunpack.c.h.b16 %v226
        %v251 = vpack.c.b16 %v245, %v243
        %v252 = vpack.c.b16 %v246, %v244
        %v253 = vpack.c.b16 %v249, %v247
        %v254 = vpack.c.b16 %v250, %v248
        %vm259 = vcmask 261120
        %v261 = vsel %vm259, %v222, 0
        %263 = vmatprep.subr.bf16.mxu0 0
        %264 = vmatpush1.bf16.msra.mxu0 0
        %265 = vmatprep.subr.bf16.mxu0 0
        %266 = vmatpush1.bf16.msra.mxu0 0
        %267 = vmatprep.subr.bf16.mxu0 0
        %268 = vmatpush1.bf16.msra.mxu0 0
        %269 = vmatprep.subr.bf16.mxu0 0
        %270 = vmatpush1.bf16.msra.mxu0 0
        %271 = vmatprep.subr.bf16.mxu0 0
        %272 = vmatpush1.bf16.msra.mxu0 0
        %273 = vmatprep.subr.bf16.mxu0 0
        %274 = vmatpush1.bf16.msra.mxu0 0
        %275 = vmatprep.subr.bf16.mxu0 %v254
        %276 = vmatpush1.bf16.msra.mxu0 %v253
        %277 = vmatprep.subr.bf16.mxu0 %v252
        %278 = vmatpush1.bf16.msra.mxu0 %v251
        %279 = vmatprep.subr.bf16.mxu0 0
        %280 = vmatpush2.bf16.msra.mxu0 0
        %281 = vmatprep.subr.bf16.mxu0 0
        %282 = vmatpush2.bf16.msra.mxu0 0
        %283 = vmatprep.subr.bf16.mxu0 0
        %284 = vmatpush2.bf16.msra.mxu0 0
        %285 = vmatprep.subr.bf16.mxu0 0
        %286 = vmatpush2.bf16.msra.mxu0 0
        %287 = vmatprep.subr.bf16.mxu0 0
        %288 = vmatpush2.bf16.msra.mxu0 0
        %289 = vmatprep.subr.bf16.mxu0 0
        %290 = vmatpush2.bf16.msra.mxu0 0
        %291 = vmatprep.subr.bf16.mxu0 0
        %292 = vmatpush2.bf16.msra.mxu0 0
        %293 = vmatprep.subr.bf16.mxu0 0
        %294 = vmatpush2.bf16.msra.mxu0 0
        %295 = vmatprep.mubr.bf16.mxu0 0
        %296 = vmatmul.mubr.bf16.gmra.mxu0 %v261
        %v297 = vpop.f32.mrf.mxu0
        %v298 = vadd.f32 %v232, %v297
        %v299 = vpop.f32.mrf.mxu0
        %v300 = vadd.f32 %v236, %v299
        %v301 = vpop.f32.mrf.mxu0
        %v302 = vpop.f32.mrf.mxu0
        %303 = vdwg.mxu0
        %v304 = vmul.f32 %v298, 0.5
        %v305 = vmul.f32 %v300, 0.5
        %v306 = vmul.f32 %v298, 0.70710677
        %v307 = vmul.f32 %v300, 0.70710677
        %v308 = vand.u32 2147483647, %v306
        %v309 = vand.u32 2147483647, %v307
        %v310 = vmul.f32 %v308, 0.3275911
        %v311 = vmul.f32 %v309, 0.3275911
        %v312 = vadd.f32 %v310, 1.0
        %v313 = vadd.f32 %v311, 1.0
        %v314 = vrcp.pop %v312
        %v315 = vrcp.pop %v313
        %v316 = vmul.f32 %v314, 1.0614054
        %v317 = vmul.f32 %v315, 1.0614054
        %v318 = vadd.f32 %v316, -1.4531521
        %v319 = vadd.f32 %v317, -1.4531521
        %v320 = vmul.f32 %v318, %v314
        %v321 = vmul.f32 %v319, %v315
        %v322 = vadd.f32 %v320, 1.4214138
        %v323 = vadd.f32 %v321, 1.4214138
        %v324 = vmul.f32 %v322, %v314
        %v325 = vmul.f32 %v323, %v315
        %v326 = vadd.f32 %v324, -0.28449672
        %v327 = vadd.f32 %v325, -0.28449672
        %v328 = vmul.f32 %v326, %v314
        %v329 = vmul.f32 %v327, %v315
        %v330 = vadd.f32 %v328, 0.2548296
        %v331 = vadd.f32 %v329, 0.2548296
        %v332 = vmul.f32 %v330, %v314
        %v333 = vmul.f32 %v331, %v315
        %v334 = vsub.f32 0.0, %v308
        %v335 = vsub.f32 0.0, %v309
        %v336 = vmul.f32 %v334, %v308
        %v337 = vmul.f32 %v335, %v309
        %v338 = vmul.f32 %v336, 1.442695
        %v339 = vpow.pop %v338
        %v340 = vmul.f32 %v337, 1.442695
        %v341 = vpow.pop %v340
        %v342 = vmul.f32 %v332, %v339
        %v343 = vmul.f32 %v333, %v341
        %v344 = vsub.f32 1.0, %v342
        %v345 = vsub.f32 1.0, %v343
        %vm346 = vcmp.ge.f32.partialorder %v306, 0.0
        %vm347 = vcmp.ge.f32.partialorder %v307, 0.0
        %v348 = vsub.f32 0.0, %v344
        %v349 = vsub.f32 0.0, %v345
        %v350 = vsel %vm346, %v344, %v348
        %v351 = vsel %vm347, %v345, %v349
        %v352 = vadd.f32 %v350, 1.0
        %v353 = vadd.f32 %v351, 1.0
        %v354 = vmul.f32 %v304, %v352
        %v355 = vmul.f32 %v305, %v353
        %v356 = vpack.c.bf16 %v354, %v354
        %v357 = vpack.c.bf16 %v355, %v355
        %v358 = vld [vmem:[%s3] sm:$0xf]
        %v359 = vld [vmem:[%s3 + $0x4] sm:$0xf]
        %v360 = vld [vmem:[%s3 + $0x8] sm:$0xf]
        %v361 = vld [vmem:[%s3 + $0xc] sm:$0xf]
        %v362 = vld [vmem:[%s3 + $0x10] sm:$0xf]
        %v363 = vld [vmem:[%s3 + $0x14] sm:$0xf]
        %v364 = vld [vmem:[%s3 + $0x18] sm:$0xf]
        %v365 = vld [vmem:[%s3 + $0x1c] sm:$0xf]
        %v366 = vld [vmem:[%s3 + $0x20] sm:$0xf]
        %v367 = vld [vmem:[%s3 + $0x24] sm:$0xf]
        %v368 = vld [vmem:[%s3 + $0x28] sm:$0xf]
        %v369 = vld [vmem:[%s3 + $0x2c] sm:$0xf]
        %v370 = vld [vmem:[%s3 + $0x30] sm:$0xf]
        %v371 = vld [vmem:[%s3 + $0x34] sm:$0xf]
        %v372 = vld [vmem:[%s3 + $0x38] sm:$0xf]
        %v373 = vld [vmem:[%s3 + $0x3c] sm:$0xf]
        %v374 = vld [vmem:[%s3 + $0x40] sm:$0xf]
        %v375 = vld [vmem:[%s3 + $0x44] sm:$0xf]
        %v376 = vld [vmem:[%s3 + $0x48] sm:$0xf]
        %v377 = vld [vmem:[%s3 + $0x4c] sm:$0xf]
        %v378 = vld [vmem:[%s3 + $0x50] sm:$0xf]
        %v379 = vld [vmem:[%s3 + $0x54] sm:$0xf]
        %v380 = vld [vmem:[%s3 + $0x58] sm:$0xf]
        %v381 = vld [vmem:[%s3 + $0x5c] sm:$0xf]
        %v382 = vld [vmem:[%s3 + $0x60] sm:$0xf]
        %v383 = vld [vmem:[%s3 + $0x64] sm:$0xf]
        %v384 = vld [vmem:[%s3 + $0x68] sm:$0xf]
        %v385 = vld [vmem:[%s3 + $0x6c] sm:$0xf]
        %v386 = vld [vmem:[%s3 + $0x70] sm:$0xf]
        %v387 = vld [vmem:[%s3 + $0x74] sm:$0xf]
        %v388 = vld [vmem:[%s3 + $0x78] sm:$0xf]
        %v389 = vld [vmem:[%s3 + $0x7c] sm:$0xf]
        %v390 = vld [vmem:[%s4] sm:$0x1]
        %v392 = vlaneseq
        %v393 = vshrl.u32 %v392, 7
        %v394 = vsub.s32 0, %v393
        %v395 = vrot.slane %v390, %v394
        %v429 = vunpack.c.l.b16 %v358
        %v430 = vunpack.c.l.b16 %v359
        %v431 = vunpack.c.l.b16 %v360
        %v432 = vunpack.c.l.b16 %v361
        %v433 = vunpack.c.l.b16 %v362
        %v434 = vunpack.c.l.b16 %v363
        %v435 = vunpack.c.l.b16 %v364
        %v436 = vunpack.c.l.b16 %v365
        %v437 = vunpack.c.l.b16 %v366
        %v438 = vunpack.c.l.b16 %v367
        %v439 = vunpack.c.l.b16 %v368
        %v440 = vunpack.c.l.b16 %v369
        %v441 = vunpack.c.l.b16 %v370
        %v442 = vunpack.c.l.b16 %v371
        %v443 = vunpack.c.l.b16 %v372
        %v444 = vunpack.c.l.b16 %v373
        %v445 = vunpack.c.l.b16 %v374
        %v446 = vunpack.c.l.b16 %v375
        %v447 = vunpack.c.l.b16 %v376
        %v448 = vunpack.c.l.b16 %v377
        %v449 = vunpack.c.l.b16 %v378
        %v450 = vunpack.c.l.b16 %v379
        %v451 = vunpack.c.l.b16 %v380
        %v452 = vunpack.c.l.b16 %v381
        %v453 = vunpack.c.l.b16 %v382
        %v454 = vunpack.c.l.b16 %v383
        %v455 = vunpack.c.l.b16 %v384
        %v456 = vunpack.c.l.b16 %v385
        %v457 = vunpack.c.l.b16 %v386
        %v458 = vunpack.c.l.b16 %v387
        %v459 = vunpack.c.l.b16 %v388
        %v460 = vunpack.c.l.b16 %v389
        %v461 = vpack.c.b16 %v430, %v429
        %v462 = vpack.c.b16 %v432, %v431
        %v463 = vpack.c.b16 %v434, %v433
        %v464 = vpack.c.b16 %v436, %v435
        %v465 = vpack.c.b16 %v438, %v437
        %v466 = vpack.c.b16 %v440, %v439
        %v467 = vpack.c.b16 %v442, %v441
        %v468 = vpack.c.b16 %v444, %v443
        %v469 = vpack.c.b16 %v446, %v445
        %v470 = vpack.c.b16 %v448, %v447
        %v471 = vpack.c.b16 %v450, %v449
        %v472 = vpack.c.b16 %v452, %v451
        %v473 = vpack.c.b16 %v454, %v453
        %v474 = vpack.c.b16 %v456, %v455
        %v475 = vpack.c.b16 %v458, %v457
        %v476 = vpack.c.b16 %v460, %v459
        %493 = vmatprep.subr.bf16.mxu0 0
        %494 = vmatpush1.bf16.msra.mxu0 %v468
        %495 = vmatprep.subr.bf16.mxu0 0
        %496 = vmatpush1.bf16.msra.mxu0 %v467
        %497 = vmatprep.subr.bf16.mxu0 0
        %498 = vmatpush1.bf16.msra.mxu0 %v466
        %499 = vmatprep.subr.bf16.mxu0 0
        %500 = vmatpush1.bf16.msra.mxu0 %v465
        %501 = vmatprep.subr.bf16.mxu0 0
        %502 = vmatpush1.bf16.msra.mxu0 %v464
        %503 = vmatprep.subr.bf16.mxu0 0
        %504 = vmatpush1.bf16.msra.mxu0 %v463
        %505 = vmatprep.subr.bf16.mxu0 0
        %506 = vmatpush1.bf16.msra.mxu0 %v462
        %507 = vmatprep.subr.bf16.mxu0 0
        %508 = vmatpush1.bf16.msra.mxu0 %v461
        %509 = vmatprep.subr.bf16.mxu0 0
        %510 = vmatpush2.bf16.msra.mxu0 %v476
        %511 = vmatprep.subr.bf16.mxu0 0
        %512 = vmatpush2.bf16.msra.mxu0 %v475
        %513 = vmatprep.subr.bf16.mxu0 0
        %514 = vmatpush2.bf16.msra.mxu0 %v474
        %515 = vmatprep.subr.bf16.mxu0 0
        %516 = vmatpush2.bf16.msra.mxu0 %v473
        %517 = vmatprep.subr.bf16.mxu0 0
        %518 = vmatpush2.bf16.msra.mxu0 %v472
        %519 = vmatprep.subr.bf16.mxu0 0
        %520 = vmatpush2.bf16.msra.mxu0 %v471
        %521 = vmatprep.subr.bf16.mxu0 0
        %522 = vmatpush2.bf16.msra.mxu0 %v470
        %523 = vmatprep.subr.bf16.mxu0 0
        %524 = vmatpush2.bf16.msra.mxu0 %v469
        %525 = vmatprep.mubr.bf16.mxu0 %v357
        %526 = vmatmul.mubr.bf16.gmra.mxu0 %v356
        %v527 = vpop.f32.mrf.mxu0
        %v528 = vadd.f32 %v395, %v527
        %v529 = vpop.f32.mrf.mxu0
        %v530 = vpop.f32.mrf.mxu0
        %v531 = vpop.f32.mrf.mxu0
        %532 = vdwg.mxu0
        %533 = vst.msk [vmem:[%s215] sm:$0xff] %vm259, %v528
        %s534 = sand.u32 %s137, 1
        %s535 = scalar_lea.sflag [#allocation3], %s534
        %s536 = sand.u32 %s137, 1
        %s537 = smul.addr %s536, 8
        %s538 = scalar_lea.vmem [#allocation2], %s537
        // Predicated region
        $region41: #{tpu_custom_call.1} parent=39 // pred_check
          %p539 = pneg %p147
        $region42: #{tpu_custom_call.1} parent=39 // pred_check_branch
          %541 = sbr.rel (%p539) target = $region44
        $region43: #{tpu_custom_call.1} parent=39 // pred_region
          %s543 = ssub.s32 128, 128
          %544 = vsyncadd %s535, %s543
          %s545 = smul.addr %s19, 128
          %s546 = scalar_lea.hbm %s5, %s545
          %s548 = sshll.u32 %s538, 4
          %s549 = int_to_ptr.vmem [resolvable:$true] %s548
          %551 = dma.vmem_to_hbm [thread:$0]  %s549, 128, %s546, %s535
        $region44: #{tpu_custom_call.1} parent=39 // pred_fallthru
          _
      $region40: #{tpu_custom_call.1} parent=5 // pred_fallthru
        _
      %p552 = scmp.le.s32.totalorder 2, %s14
      // Predicated region
      $region45: #{tpu_custom_call.1} parent=5 // pred_check
        %p553 = pneg %p552
      $region46: #{tpu_custom_call.1} parent=5 // pred_check_branch
        %555 = sbr.rel (%p553) target = $region48
      $region47: #{tpu_custom_call.1} parent=5 // pred_region
        %s556 = ssub.s32 %s14, 2
        // Predicated region
        $region49: #{tpu_custom_call.1} parent=47 // pred_check
          %p557 = pneg %p153
        $region50: #{tpu_custom_call.1} parent=47 // pred_check_branch
          %559 = sbr.rel (%p557) target = $region52
        $region51: #{tpu_custom_call.1} parent=47 // pred_region
          %s560 = sand.u32 %s138, 1
          %s561 = scalar_lea.sflag [#allocation3], %s560
          %s562 = sand.u32 %s138, 1
          %s563 = smul.addr %s562, 8
          %s564 = scalar_lea.vmem [#allocation2], %s563
          %565 = dma.done %s561, 128
        $region52: #{tpu_custom_call.1} parent=47 // pred_fallthru
          _
      $region48: #{tpu_custom_call.1} parent=5 // pred_fallthru
        _
    $region6: #{tpu_custom_call.1} parent=1 // loop_footer
      %s18 = sadd.s32 1, %s14
    $region7: #{tpu_custom_call.1} parent=1 // loop_footer_branch
      %13 = sbr.rel target = $region3
    $region8: #{tpu_custom_call.1} parent=1 // loop_exit
      _
    %566 = vsyncpa [#allocation3], 1
    %s567 = scalar_lea.sflag [#allocation3], 1
    %568 = vsyncpa %s567, 1

</llo_original>
